<compile_context>
chip_gen: v7x
topology: tpu7x:2x2x1
jax: 0.10.0
libtpu: 0.0.40
codegen_flags: <defaults>
</compile_context>

<pallas_src>
import functools

import jax
import jax.numpy as jnp
from jax import lax
from jax.experimental import pallas as pl
from jax.experimental.pallas import tpu as pltpu

IN_FEATURES = 48
D_K = 8  # out_features of the q/k/v projections


def ultimus_kernel(x_ref, wqkv_t_ref, bqkv_ref, wo_ref, bo_ref, out_ref):
    # Fused q/k/v projection on the MXU with batch on the LANE axis:
    # [24, 48] x [tb, 48]^T -> [24, tb]  (contraction on dim 1 of both; no
    # explicit transpose materialized).  1/sqrt(d_k) is pre-folded into the
    # q rows of wqkv_t / bqkv.
    x = x_ref[...].astype(jnp.float32)
    qkvt = lax.dot_general(
        wqkv_t_ref[...], x,
        dimension_numbers=(((1,), (1,)), ((), ())),
        preferred_element_type=jnp.float32) + bqkv_ref[...]          # [24, tb]

    qs = qkvt[0 * D_K:1 * D_K, :]   # scaled q, [8, tb]
    kt = qkvt[1 * D_K:2 * D_K, :]   # k,        [8, tb]
    vt = qkvt[2 * D_K:3 * D_K, :]   # v,        [8, tb]

    # Exact softmax max without a 64 x tb reduction:
    #   m[j, b] = max_i qs[i, b] * kt[j, b]
    #           = (kt[j, b] >= 0 ? qmax[b] : qmin[b]) * kt[j, b]
    qmax = jnp.max(qs, axis=0, keepdims=True)                        # [1, tb]
    qmin = jnp.min(qs, axis=0, keepdims=True)                        # [1, tb]
    m = jnp.where(kt >= 0.0, qmax, qmin) * kt                        # [8, tb]

    # Streamed softmax + v-weighted sum over the size-8 reduction axis i.
    # Only [8, tb] accumulators stay live (no [8, 8, tb] temporaries).
    #   s[j, b]  = sum_i exp(qs[i,b]*kt[j,b] - m[j,b])
    #   z[j, b]  = sum_i vt[i,b] * exp(qs[i,b]*kt[j,b] - m[j,b])
    e = jnp.exp(qs[0:1, :] * kt - m)
    s = e
    z = vt[0:1, :] * e
    for i in range(1, D_K):                                          # unrolled x7
        e = jnp.exp(qs[i:i + 1, :] * kt - m)
        s = s + e
        z = z + vt[i:i + 1, :] * e

    # Deferred normalization: one [8, tb] reciprocal (EUP) + Newton refine
    # (keeps the result at f32 accuracy) instead of a 64 x tb divide.
    inv = pl.reciprocal(s, approx=True)
    inv = inv * (2.0 - s * inv)
    zt = z * inv                                                     # [8, tb]

    # fc_out on the MXU: [8, tb]^T x [8, 48] -> [tb, 48] (contraction on dim 0
    # of both; no explicit transpose materialized).
    out = lax.dot_general(
        zt, wo_ref[...],
        dimension_numbers=(((0,), (0,)), ((), ())),
        preferred_element_type=jnp.float32) + bo_ref[...]            # [tb, 48]
    out_ref[...] = out.astype(out_ref.dtype)


def fuse_params(p):
    """One-time prep: fuse q/k/v weights (scale folded into q). Not per-call work."""
    scale = 1.0 / (float(D_K) ** 0.5)
    wqkv_t = jnp.concatenate(
        [p["wq"].T * scale, p["wk"].T, p["wv"].T], axis=0)           # [24, 48]
    bqkv = jnp.concatenate(
        [p["bq"] * scale, p["bk"], p["bv"]], axis=1).T               # [24, 1]
    return dict(wqkv_t=wqkv_t, bqkv=bqkv, wo=p["wo"], bo=p["bo"])


@functools.partial(jax.jit, static_argnames=("tile_b",))
def ultimus_block(x, fused, tile_b=8192):
    B = x.shape[0]
    # Tile is a multiple of 128 (batch sits on lanes in-kernel), no bigger than
    # needed for B.  With the streamed softmax the per-tile working set at
    # tb=8192 is ~18 MiB (x/out double-buffered + [24,tb] qkv + a few [8,tb]
    # accumulators), well under the explicit 48 MiB scoped-VMEM limit and the
    # 64 MiB/TC physical VMEM on v7x.
    tb = min(int(tile_b), 128 * pl.cdiv(B, 128))
    tb = max(128, (tb // 128) * 128)
    Bp = tb * pl.cdiv(B, tb)
    xp = x if Bp == B else jnp.pad(x, ((0, Bp - B), (0, 0)))

    out = pl.pallas_call(
        ultimus_kernel,
        out_shape=jax.ShapeDtypeStruct((Bp, IN_FEATURES), jnp.float32),
        grid=(Bp // tb,),
        in_specs=[
            pl.BlockSpec((tb, IN_FEATURES), lambda i: (i, 0)),        # x tile
            pl.BlockSpec((3 * D_K, IN_FEATURES), lambda i: (0, 0)),   # wqkv_t (resident)
            pl.BlockSpec((3 * D_K, 1), lambda i: (0, 0)),             # bqkv   (resident)
            pl.BlockSpec((D_K, IN_FEATURES), lambda i: (0, 0)),       # wo     (resident)
            pl.BlockSpec((1, IN_FEATURES), lambda i: (0, 0)),         # bo     (resident)
        ],
        out_specs=pl.BlockSpec((tb, IN_FEATURES), lambda i: (i, 0)),
        compiler_params=pltpu.CompilerParams(
            dimension_semantics=("parallel",),                        # megacore on v7x
            vmem_limit_bytes=48 * 1024 * 1024),
    )(xp, fused["wqkv_t"], fused["bqkv"], fused["wo"], fused["bo"])

    return out[:B].reshape(B, 1, IN_FEATURES)  # match torch output shape [B, 1, 48]


def init_params(key):
    """Deterministic init mimicking torch.nn.Linear (uniform(-1/sqrt(in), 1/sqrt(in)))."""
    ks = jax.random.split(key, 8)

    def linear(kw, kb, fan_in, fan_out):
        bound = 1.0 / (fan_in ** 0.5)
        w = jax.random.uniform(kw, (fan_in, fan_out), jnp.float32, -bound, bound)
        b = jax.random.uniform(kb, (1, fan_out), jnp.float32, -bound, bound)
        return w, b

    wk, bk = linear(ks[0], ks[1], IN_FEATURES, D_K)
    wq, bq = linear(ks[2], ks[3], IN_FEATURES, D_K)
    wv, bv = linear(ks[4], ks[5], IN_FEATURES, D_K)
    wo, bo = linear(ks[6], ks[7], D_K, IN_FEATURES)
    return dict(wk=wk, bk=bk, wq=wq, bq=bq, wv=wv, bv=bv, wo=wo, bo=bo)


def ultimus_reference(x, p):
    """Pure-JAX reference of the torch forward pass (unfused params), for checking."""
    k = x @ p["wk"] + p["bk"]
    q = x @ p["wq"] + p["bq"]
    v = x @ p["wv"] + p["bv"]
    am = q[:, :, None] * k[:, None, :] / (D_K ** 0.5)   # [B, 8, 8]
    am = jax.nn.softmax(am, axis=1)
    z = jnp.einsum("bi,bij->bj", v, am)
    out = z @ p["wo"] + p["bo"]
    return out.reshape(x.shape[0], 1, IN_FEATURES)


if __name__ == "__main__":
    key = jax.random.PRNGKey(0)
    k_x, k_p = jax.random.split(key)

    B = 2
    x = jax.random.normal(k_x, (B, IN_FEATURES), dtype=jnp.float32)
    params = init_params(k_p)
    fused = fuse_params(params)   # one-time weight fusion / scale fold

    out = ultimus_block(x, fused)
    out = jax.block_until_ready(out)

    ref = ultimus_reference(x, params)
    assert out.shape == (B, 1, IN_FEATURES)
    assert jnp.allclose(out, ref, atol=1e-4, rtol=1e-4), float(
        jnp.max(jnp.abs(out - ref)))

    print("KERNEL_OK")
</pallas_src>

<mosaic_0001>
module attributes {stable_mosaic.version = 11 : i64} {
  func.func @ultimus_kernel(%arg0: i32, %arg1: memref<128x48xf32, #tpu.memory_space<vmem>>, %arg2: memref<24x48xf32, #tpu.memory_space<vmem>>, %arg3: memref<24x1xf32, #tpu.memory_space<vmem>>, %arg4: memref<8x48xf32, #tpu.memory_space<vmem>>, %arg5: memref<1x48xf32, #tpu.memory_space<vmem>>, %arg6: memref<128x48xf32, #tpu.memory_space<vmem>>) attributes {dimension_semantics = [#tpu.dimension_semantics<parallel>], iteration_bounds = array<i64: 1>, scalar_prefetch = 0 : i64, scratch_operands = 0 : i64, tpu.core_type = #tpu.core_type<tc>, window_params = [{transform_indices = @transform_0, window_bounds = array<i64: 128, 48>}, {pipeline_mode = #tpu.pipeline_mode<synchronous>, transform_indices = @transform_1, window_bounds = array<i64: 24, 48>}, {pipeline_mode = #tpu.pipeline_mode<synchronous>, transform_indices = @transform_2, window_bounds = array<i64: 24, 1>}, {pipeline_mode = #tpu.pipeline_mode<synchronous>, transform_indices = @transform_3, window_bounds = array<i64: 8, 48>}, {pipeline_mode = #tpu.pipeline_mode<synchronous>, transform_indices = @transform_4, window_bounds = array<i64: 1, 48>}, {transform_indices = @transform_5, window_bounds = array<i64: 128, 48>}]} {
    %c0 = arith.constant 0 : index
    %c0_0 = arith.constant 0 : index
    %0 = vector.load %arg1[%c0, %c0_0] : memref<128x48xf32, #tpu.memory_space<vmem>>, vector<128x48xf32>
    %c0_1 = arith.constant 0 : index
    %c0_2 = arith.constant 0 : index
    %1 = vector.load %arg2[%c0_1, %c0_2] : memref<24x48xf32, #tpu.memory_space<vmem>>, vector<24x48xf32>
    %cst = arith.constant dense<0.000000e+00> : vector<24x128xf32>
    %2 = tpu.matmul %1, %0, %cst {dimension_numbers = #tpu.dot_dimension_numbers<[1], [1], [0], [0], [0, 0, 1, 0], [], []>} : vector<24x48xf32>, vector<128x48xf32>, vector<24x128xf32> -> vector<24x128xf32>
    %c0_3 = arith.constant 0 : index
    %c0_4 = arith.constant 0 : index
    %3 = vector.load %arg3[%c0_3, %c0_4] : memref<24x1xf32, #tpu.memory_space<vmem>>, vector<24x1xf32>
    %4 = vector.broadcast %3 : vector<24x1xf32> to vector<24x128xf32>
    %5 = arith.addf %2, %4 : vector<24x128xf32>
    %6 = vector.extract_strided_slice %5 {offsets = [0, 0], sizes = [8, 128], strides = [1, 1]} : vector<24x128xf32> to vector<8x128xf32>
    %7 = vector.extract_strided_slice %5 {offsets = [8, 0], sizes = [8, 128], strides = [1, 1]} : vector<24x128xf32> to vector<8x128xf32>
    %8 = vector.extract_strided_slice %5 {offsets = [16, 0], sizes = [8, 128], strides = [1, 1]} : vector<24x128xf32> to vector<8x128xf32>
    %cst_5 = arith.constant dense<0xFF800000> : vector<128xf32>
    %9 = vector.multi_reduction <maximumf>, %6, %cst_5 [0] : vector<8x128xf32> to vector<128xf32>
    %10 = vector.shape_cast %9 : vector<128xf32> to vector<1x128xf32>
    %cst_6 = arith.constant dense<0x7F800000> : vector<128xf32>
    %11 = vector.multi_reduction <minimumf>, %6, %cst_6 [0] : vector<8x128xf32> to vector<128xf32>
    %12 = vector.shape_cast %11 : vector<128xf32> to vector<1x128xf32>
    %cst_7 = arith.constant 0.000000e+00 : f32
    %13 = vector.broadcast %cst_7 : f32 to vector<8x128xf32>
    %14 = arith.cmpf oge, %7, %13 : vector<8x128xf32>
    %15 = vector.shape_cast %10 : vector<1x128xf32> to vector<1x128xf32>
    %16 = vector.broadcast %15 : vector<1x128xf32> to vector<8x128xf32>
    %17 = vector.shape_cast %12 : vector<1x128xf32> to vector<1x128xf32>
    %18 = vector.broadcast %17 : vector<1x128xf32> to vector<8x128xf32>
    %19 = arith.select %14, %16, %18 : vector<8x128xi1>, vector<8x128xf32>
    %20 = arith.mulf %19, %7 : vector<8x128xf32>
    %21 = vector.extract_strided_slice %6 {offsets = [0, 0], sizes = [1, 128], strides = [1, 1]} : vector<8x128xf32> to vector<1x128xf32>
    %22 = vector.broadcast %21 : vector<1x128xf32> to vector<8x128xf32>
    %23 = arith.mulf %22, %7 : vector<8x128xf32>
    %24 = arith.subf %23, %20 : vector<8x128xf32>
    %25 = math.exp %24 : vector<8x128xf32>
    %26 = vector.extract_strided_slice %8 {offsets = [0, 0], sizes = [1, 128], strides = [1, 1]} : vector<8x128xf32> to vector<1x128xf32>
    %27 = vector.broadcast %26 : vector<1x128xf32> to vector<8x128xf32>
    %28 = arith.mulf %27, %25 : vector<8x128xf32>
    %29 = vector.extract_strided_slice %6 {offsets = [1, 0], sizes = [1, 128], strides = [1, 1]} : vector<8x128xf32> to vector<1x128xf32>
    %30 = vector.broadcast %29 : vector<1x128xf32> to vector<8x128xf32>
    %31 = arith.mulf %30, %7 : vector<8x128xf32>
    %32 = arith.subf %31, %20 : vector<8x128xf32>
    %33 = math.exp %32 : vector<8x128xf32>
    %34 = arith.addf %25, %33 : vector<8x128xf32>
    %35 = vector.extract_strided_slice %8 {offsets = [1, 0], sizes = [1, 128], strides = [1, 1]} : vector<8x128xf32> to vector<1x128xf32>
    %36 = vector.broadcast %35 : vector<1x128xf32> to vector<8x128xf32>
    %37 = arith.mulf %36, %33 : vector<8x128xf32>
    %38 = arith.addf %28, %37 : vector<8x128xf32>
    %39 = vector.extract_strided_slice %6 {offsets = [2, 0], sizes = [1, 128], strides = [1, 1]} : vector<8x128xf32> to vector<1x128xf32>
    %40 = vector.broadcast %39 : vector<1x128xf32> to vector<8x128xf32>
    %41 = arith.mulf %40, %7 : vector<8x128xf32>
    %42 = arith.subf %41, %20 : vector<8x128xf32>
    %43 = math.exp %42 : vector<8x128xf32>
    %44 = arith.addf %34, %43 : vector<8x128xf32>
    %45 = vector.extract_strided_slice %8 {offsets = [2, 0], sizes = [1, 128], strides = [1, 1]} : vector<8x128xf32> to vector<1x128xf32>
    %46 = vector.broadcast %45 : vector<1x128xf32> to vector<8x128xf32>
    %47 = arith.mulf %46, %43 : vector<8x128xf32>
    %48 = arith.addf %38, %47 : vector<8x128xf32>
    %49 = vector.extract_strided_slice %6 {offsets = [3, 0], sizes = [1, 128], strides = [1, 1]} : vector<8x128xf32> to vector<1x128xf32>
    %50 = vector.broadcast %49 : vector<1x128xf32> to vector<8x128xf32>
    %51 = arith.mulf %50, %7 : vector<8x128xf32>
    %52 = arith.subf %51, %20 : vector<8x128xf32>
    %53 = math.exp %52 : vector<8x128xf32>
    %54 = arith.addf %44, %53 : vector<8x128xf32>
    %55 = vector.extract_strided_slice %8 {offsets = [3, 0], sizes = [1, 128], strides = [1, 1]} : vector<8x128xf32> to vector<1x128xf32>
    %56 = vector.broadcast %55 : vector<1x128xf32> to vector<8x128xf32>
    %57 = arith.mulf %56, %53 : vector<8x128xf32>
    %58 = arith.addf %48, %57 : vector<8x128xf32>
    %59 = vector.extract_strided_slice %6 {offsets = [4, 0], sizes = [1, 128], strides = [1, 1]} : vector<8x128xf32> to vector<1x128xf32>
    %60 = vector.broadcast %59 : vector<1x128xf32> to vector<8x128xf32>
    %61 = arith.mulf %60, %7 : vector<8x128xf32>
    %62 = arith.subf %61, %20 : vector<8x128xf32>
    %63 = math.exp %62 : vector<8x128xf32>
    %64 = arith.addf %54, %63 : vector<8x128xf32>
    %65 = vector.extract_strided_slice %8 {offsets = [4, 0], sizes = [1, 128], strides = [1, 1]} : vector<8x128xf32> to vector<1x128xf32>
    %66 = vector.broadcast %65 : vector<1x128xf32> to vector<8x128xf32>
    %67 = arith.mulf %66, %63 : vector<8x128xf32>
    %68 = arith.addf %58, %67 : vector<8x128xf32>
    %69 = vector.extract_strided_slice %6 {offsets = [5, 0], sizes = [1, 128], strides = [1, 1]} : vector<8x128xf32> to vector<1x128xf32>
    %70 = vector.broadcast %69 : vector<1x128xf32> to vector<8x128xf32>
    %71 = arith.mulf %70, %7 : vector<8x128xf32>
    %72 = arith.subf %71, %20 : vector<8x128xf32>
    %73 = math.exp %72 : vector<8x128xf32>
    %74 = arith.addf %64, %73 : vector<8x128xf32>
    %75 = vector.extract_strided_slice %8 {offsets = [5, 0], sizes = [1, 128], strides = [1, 1]} : vector<8x128xf32> to vector<1x128xf32>
    %76 = vector.broadcast %75 : vector<1x128xf32> to vector<8x128xf32>
    %77 = arith.mulf %76, %73 : vector<8x128xf32>
    %78 = arith.addf %68, %77 : vector<8x128xf32>
    %79 = vector.extract_strided_slice %6 {offsets = [6, 0], sizes = [1, 128], strides = [1, 1]} : vector<8x128xf32> to vector<1x128xf32>
    %80 = vector.broadcast %79 : vector<1x128xf32> to vector<8x128xf32>
    %81 = arith.mulf %80, %7 : vector<8x128xf32>
    %82 = arith.subf %81, %20 : vector<8x128xf32>
    %83 = math.exp %82 : vector<8x128xf32>
    %84 = arith.addf %74, %83 : vector<8x128xf32>
    %85 = vector.extract_strided_slice %8 {offsets = [6, 0], sizes = [1, 128], strides = [1, 1]} : vector<8x128xf32> to vector<1x128xf32>
    %86 = vector.broadcast %85 : vector<1x128xf32> to vector<8x128xf32>
    %87 = arith.mulf %86, %83 : vector<8x128xf32>
    %88 = arith.addf %78, %87 : vector<8x128xf32>
    %89 = vector.extract_strided_slice %6 {offsets = [7, 0], sizes = [1, 128], strides = [1, 1]} : vector<8x128xf32> to vector<1x128xf32>
    %90 = vector.broadcast %89 : vector<1x128xf32> to vector<8x128xf32>
    %91 = arith.mulf %90, %7 : vector<8x128xf32>
    %92 = arith.subf %91, %20 : vector<8x128xf32>
    %93 = math.exp %92 : vector<8x128xf32>
    %94 = arith.addf %84, %93 : vector<8x128xf32>
    %95 = vector.extract_strided_slice %8 {offsets = [7, 0], sizes = [1, 128], strides = [1, 1]} : vector<8x128xf32> to vector<1x128xf32>
    %96 = vector.broadcast %95 : vector<1x128xf32> to vector<8x128xf32>
    %97 = arith.mulf %96, %93 : vector<8x128xf32>
    %98 = arith.addf %88, %97 : vector<8x128xf32>
    %99 = tpu.reciprocal %94 {approx = true} : vector<8x128xf32> -> vector<8x128xf32>
    %100 = arith.mulf %94, %99 : vector<8x128xf32>
    %cst_8 = arith.constant 2.000000e+00 : f32
    %101 = vector.broadcast %cst_8 : f32 to vector<8x128xf32>
    %102 = arith.subf %101, %100 : vector<8x128xf32>
    %103 = arith.mulf %99, %102 : vector<8x128xf32>
    %104 = arith.mulf %98, %103 : vector<8x128xf32>
    %c0_9 = arith.constant 0 : index
    %c0_10 = arith.constant 0 : index
    %105 = vector.load %arg4[%c0_9, %c0_10] : memref<8x48xf32, #tpu.memory_space<vmem>>, vector<8x48xf32>
    %cst_11 = arith.constant dense<0.000000e+00> : vector<128x48xf32>
    %106 = tpu.matmul %104, %105, %cst_11 {dimension_numbers = #tpu.dot_dimension_numbers<[0], [0], [1], [1], [0, 1, 1, 1], [], []>} : vector<8x128xf32>, vector<8x48xf32>, vector<128x48xf32> -> vector<128x48xf32>
    %c0_12 = arith.constant 0 : index
    %c0_13 = arith.constant 0 : index
    %107 = vector.load %arg5[%c0_12, %c0_13] : memref<1x48xf32, #tpu.memory_space<vmem>>, vector<1x48xf32>
    %108 = vector.broadcast %107 : vector<1x48xf32> to vector<128x48xf32>
    %109 = arith.addf %106, %108 : vector<128x48xf32>
    %c0_14 = arith.constant 0 : index
    %c0_15 = arith.constant 0 : index
    %110 = vector.load %arg6[%c0_14, %c0_15] : memref<128x48xf32, #tpu.memory_space<vmem>>, vector<128x48xf32>
    tpu.vector_store %arg6[%c0_14, %c0_15], %109 {strides = array<i32>} : memref<128x48xf32, #tpu.memory_space<vmem>>, vector<128x48xf32>,
    return
  }
  func.func @transform_0(%arg0: i32) -> (i32, i32) {
    %c0_i32 = arith.constant 0 : i32
    %c0_i32_0 = arith.constant 0 : i32
    return %arg0, %c0_i32 : i32, i32
  }
  func.func @transform_1(%arg0: i32) -> (i32, i32) {
    %c0_i32 = arith.constant 0 : i32
    %c0_i32_0 = arith.constant 0 : i32
    %c0_i32_1 = arith.constant 0 : i32
    return %c0_i32, %c0_i32_0 : i32, i32
  }
  func.func @transform_2(%arg0: i32) -> (i32, i32) {
    %c0_i32 = arith.constant 0 : i32
    %c0_i32_0 = arith.constant 0 : i32
    %c0_i32_1 = arith.constant 0 : i32
    return %c0_i32, %c0_i32_0 : i32, i32
  }
  func.func @transform_3(%arg0: i32) -> (i32, i32) {
    %c0_i32 = arith.constant 0 : i32
    %c0_i32_0 = arith.constant 0 : i32
    %c0_i32_1 = arith.constant 0 : i32
    return %c0_i32, %c0_i32_0 : i32, i32
  }
  func.func @transform_4(%arg0: i32) -> (i32, i32) {
    %c0_i32 = arith.constant 0 : i32
    %c0_i32_0 = arith.constant 0 : i32
    %c0_i32_1 = arith.constant 0 : i32
    return %c0_i32, %c0_i32_0 : i32, i32
  }
  func.func @transform_5(%arg0: i32) -> (i32, i32) {
    %c0_i32 = arith.constant 0 : i32
    %c0_i32_0 = arith.constant 0 : i32
    return %arg0, %c0_i32 : i32, i32
  }
}

</mosaic_0001>

<llo_original>
// kernel: ultimus_block.1
$region0: #{ultimus_block.1}
  #allocation0 [shape = 'u32[]', space=smem, size = 0x4, offset = 0x4, fixed_abs, tag = 'smem constant byte address 0x4 - core index']
  #allocation1 [shape = 'u32[144,128]{1,0:T(1,128)}', space=vmem, size = 0x12000, scoped, tag = 'internal scratch']
  %s0 = inlined_call_operand.vmem [shape: f32[128,48], index: 0, kind: input, shape index: {}]
  %s1 = inlined_call_operand.vmem [shape: f32[24,48], index: 1, kind: input, shape index: {}]
  %s2 = inlined_call_operand.vmem [shape: f32[24,1], index: 2, kind: input, shape index: {}]
  %s3 = inlined_call_operand.vmem [shape: f32[8,48], index: 3, kind: input, shape index: {}]
  %s4 = inlined_call_operand.vmem [shape: f32[1,48], index: 4, kind: input, shape index: {}]
  %s5 = inlined_call_operand.vmem [shape: f32[128,48], index: 5, kind: output, shape index: {}]
  %s6 = sld [smem:[#allocation0]]
  $region30: #{ultimus_block.1} parent=0
    _
  %s8 = ssub.s32 1, %s6
  %s9 = scalar_select 0, %s8, %s6
  // Predicated region
  $region2: #{ultimus_block.1} parent=0 // pred_check
    _
  $region3: #{ultimus_block.1} parent=0 // pred_check_branch
    %11 = sbr.rel (0) target = $region5
  $region4: #{ultimus_block.1} parent=0 // pred_region
    _
  $region5: #{ultimus_block.1} parent=0 // pred_fallthru
    _
  // Predicated region
  $region6: #{ultimus_block.1} parent=0 // pred_check
    _
  $region7: #{ultimus_block.1} parent=0 // pred_check_branch
    %13 = sbr.rel (0) target = $region9
  $region8: #{ultimus_block.1} parent=0 // pred_region
    _
  $region9: #{ultimus_block.1} parent=0 // pred_fallthru
    _
  // Predicated region
  $region10: #{ultimus_block.1} parent=0 // pred_check
    _
  $region11: #{ultimus_block.1} parent=0 // pred_check_branch
    %15 = sbr.rel (0) target = $region13
  $region12: #{ultimus_block.1} parent=0 // pred_region
    _
  $region13: #{ultimus_block.1} parent=0 // pred_fallthru
    _
  // Predicated region
  $region14: #{ultimus_block.1} parent=0 // pred_check
    _
  $region15: #{ultimus_block.1} parent=0 // pred_check_branch
    %17 = sbr.rel (0) target = $region17
  $region16: #{ultimus_block.1} parent=0 // pred_region
    _
  $region17: #{ultimus_block.1} parent=0 // pred_fallthru
    _
  // Predicated region
  $region18: #{ultimus_block.1} parent=0 // pred_check
    _
  $region19: #{ultimus_block.1} parent=0 // pred_check_branch
    %19 = sbr.rel (0) target = $region21
  $region20: #{ultimus_block.1} parent=0 // pred_region
    _
  $region21: #{ultimus_block.1} parent=0 // pred_fallthru
    _
  %v20 = vld [vmem:[%s0] sm:$0xff]
  %v21 = vld [vmem:[%s0 + $0x8] sm:$0xff]
  %v22 = vld [vmem:[%s0 + $0x10] sm:$0xff]
  %v23 = vld [vmem:[%s0 + $0x18] sm:$0xff]
  %v24 = vld [vmem:[%s0 + $0x20] sm:$0xff]
  %v25 = vld [vmem:[%s0 + $0x28] sm:$0xff]
  %v26 = vld [vmem:[%s0 + $0x30] sm:$0xff]
  %v27 = vld [vmem:[%s0 + $0x38] sm:$0xff]
  %v28 = vld [vmem:[%s0 + $0x40] sm:$0xff]
  %v29 = vld [vmem:[%s0 + $0x48] sm:$0xff]
  %v30 = vld [vmem:[%s0 + $0x50] sm:$0xff]
  %v31 = vld [vmem:[%s0 + $0x58] sm:$0xff]
  %v32 = vld [vmem:[%s0 + $0x60] sm:$0xff]
  %v33 = vld [vmem:[%s0 + $0x68] sm:$0xff]
  %v34 = vld [vmem:[%s0 + $0x70] sm:$0xff]
  %v35 = vld [vmem:[%s0 + $0x78] sm:$0xff]
  %v36 = vld [vmem:[%s1] sm:$0xff]
  %v37 = vld [vmem:[%s1 + $0x8] sm:$0xff]
  %v38 = vld [vmem:[%s1 + $0x10] sm:$0xff]
  %v39 = vld [vmem:[%s2] sm:$0xff]
  %v40 = vld [vmem:[%s2 + $0x8] sm:$0xff]
  %v41 = vld [vmem:[%s2 + $0x10] sm:$0xff]
  %43 = vset.pattern.permute.xlu0 0
  %44 = vperm.xlu0 %43, %v39
  %v45 = vpop.permute.xlu0 %44
  %48 = vset.pattern.permute.xlu0 0
  %49 = vperm.xlu0 %48, %v40
  %v50 = vpop.permute.xlu0 %49
  %53 = vset.pattern.permute.xlu0 0
  %54 = vperm.xlu0 %53, %v41
  %v55 = vpop.permute.xlu0 %54
  %vm57 = vcmask 392192
  %v59 = vsel %vm57, %v36, 0
  %v62 = vsel %vm57, %v37, 0
  %v65 = vsel %vm57, %v38, 0
  %v68 = vsel %vm57, %v20, 0
  %v71 = vsel %vm57, %v21, 0
  %v74 = vsel %vm57, %v22, 0
  %v77 = vsel %vm57, %v23, 0
  %v80 = vsel %vm57, %v24, 0
  %v83 = vsel %vm57, %v25, 0
  %v86 = vsel %vm57, %v26, 0
  %v89 = vsel %vm57, %v27, 0
  %v92 = vsel %vm57, %v28, 0
  %v95 = vsel %vm57, %v29, 0
  %v98 = vsel %vm57, %v30, 0
  %v101 = vsel %vm57, %v31, 0
  %v104 = vsel %vm57, %v32, 0
  %v107 = vsel %vm57, %v33, 0
  %v110 = vsel %vm57, %v34, 0
  %v113 = vsel %vm57, %v35, 0
  %115 = vmatprep.subr.mxu0 0.0
  %116 = vmatpush1.xpose.msra.mxu0 %v68
  %117 = vmatprep.subr.mxu0 0.0
  %118 = vmatpush1.xpose.msra.mxu0 %v71
  %119 = vmatprep.subr.mxu0 0.0
  %120 = vmatpush1.xpose.msra.mxu0 %v74
  %121 = vmatprep.subr.mxu0 0.0
  %122 = vmatpush1.xpose.msra.mxu0 %v77
  %123 = vmatprep.subr.mxu0 0.0
  %124 = vmatpush1.xpose.msra.mxu0 %v80
  %125 = vmatprep.subr.mxu0 0.0
  %126 = vmatpush1.xpose.msra.mxu0 %v83
  %127 = vmatprep.subr.mxu0 0.0
  %128 = vmatpush1.xpose.msra.mxu0 %v86
  %129 = vmatprep.subr.mxu0 0.0
  %130 = vmatpush1.xpose.msra.mxu0 %v89
  %131 = vmatprep.subr.mxu0 0.0
  %132 = vmatpush1.xpose.msra.mxu0 %v92
  %133 = vmatprep.subr.mxu0 0.0
  %134 = vmatpush1.xpose.msra.mxu0 %v95
  %135 = vmatprep.subr.mxu0 0.0
  %136 = vmatpush1.xpose.msra.mxu0 %v98
  %137 = vmatprep.subr.mxu0 0.0
  %138 = vmatpush1.xpose.msra.mxu0 %v101
  %139 = vmatprep.subr.mxu0 0.0
  %140 = vmatpush1.xpose.msra.mxu0 %v104
  %141 = vmatprep.subr.mxu0 0.0
  %142 = vmatpush1.xpose.msra.mxu0 %v107
  %143 = vmatprep.subr.mxu0 0.0
  %144 = vmatpush1.xpose.msra.mxu0 %v110
  %145 = vmatprep.subr.mxu0 0.0
  %146 = vmatpush1.xpose.msra.mxu0 %v113
  %147 = vmatprep.subr.mxu0 0.0
  %148 = vmatpush1.xpose.msra.mxu0 0.0
  %149 = vmatprep.subr.mxu0 0.0
  %150 = vmatpush1.xpose.msra.mxu0 0.0
  %151 = vmatprep.subr.mxu0 0.0
  %152 = vmatpush1.xpose.msra.mxu0 0.0
  %153 = vmatprep.subr.mxu0 0.0
  %154 = vmatpush1.xpose.msra.mxu0 0.0
  %155 = vmatprep.subr.mxu0 0.0
  %156 = vmatpush1.xpose.msra.mxu0 0.0
  %157 = vmatprep.subr.mxu0 0.0
  %158 = vmatpush1.xpose.msra.mxu0 0.0
  %159 = vmatprep.subr.mxu0 0.0
  %160 = vmatpush1.xpose.msra.mxu0 0.0
  %161 = vmatprep.subr.mxu0 0.0
  %162 = vmatpush1.xpose.msra.mxu0 0.0
  %163 = vmatprep.subr.mxu0 0.0
  %164 = vmatpush1.xpose.msra.mxu0 0.0
  %165 = vmatprep.subr.mxu0 0.0
  %166 = vmatpush1.xpose.msra.mxu0 0.0
  %167 = vmatprep.subr.mxu0 0.0
  %168 = vmatpush1.xpose.msra.mxu0 0.0
  %169 = vmatprep.subr.mxu0 0.0
  %170 = vmatpush1.xpose.msra.mxu0 0.0
  %171 = vmatprep.subr.mxu0 0.0
  %172 = vmatpush1.xpose.msra.mxu0 0.0
  %173 = vmatprep.subr.mxu0 0.0
  %174 = vmatpush1.xpose.msra.mxu0 0.0
  %175 = vmatprep.subr.mxu0 0.0
  %176 = vmatpush1.xpose.msra.mxu0 0.0
  %177 = vmatprep.subr.mxu0 0.0
  %178 = vmatpush1.xpose.msra.mxu0 0.0
  %179 = vmatprep.mubr.f32.mxu0 0.0
  %180 = vmatmul.mubr.f32.gmra.mrb[0].mxu0 %v59
  %v181 = vpop.f32.mrb[0].mxu0
  %v182 = vadd.f32 %v45, %v181
  %v183 = vpop.f32.mrb[0].mxu0
  %184 = vmatprep.mubr.f32.mxu0 0.0
  %185 = vmatmul.mubr.f32.gmra.mrb[0].mxu0 %v62
  %v186 = vpop.f32.mrb[0].mxu0
  %v187 = vadd.f32 %v50, %v186
  %v188 = vpop.f32.mrb[0].mxu0
  %189 = vmatprep.mubr.f32.mxu0 0.0
  %190 = vmatmul.mubr.f32.gmra.mrb[0].mxu0 %v65
  %v191 = vpop.f32.mrb[0].mxu0
  %v192 = vadd.f32 %v55, %v191
  %v193 = vpop.f32.mrb[0].mxu0
  %194 = vdwg.mxu0
  %v195 = vrot.slane %v182, 4
  %v196 = vmax.f32 %v182, %v195
  %v197 = vrot.slane %v196, 2
  %v198 = vmax.f32 %v196, %v197
  %v199 = vrot.slane %v198, 1
  %v200 = vmax.f32 %v198, %v199
  %v201 = vrot.slane %v182, 4
  %v202 = vmin.f32 %v182, %v201
  %v203 = vrot.slane %v202, 2
  %v204 = vmin.f32 %v202, %v203
  %v205 = vrot.slane %v204, 1
  %v206 = vmin.f32 %v204, %v205
  %vm207 = vcmp.ge.f32.partialorder %v187, 0.0
  %v208 = vsel %vm207, %v200, %v206
  %v209 = vmul.f32 %v208, %v187
  %v210 = vlaneseq
  %v211 = vshrl.u32 %v210, 7
  %v212 = vsub.s32 0, %v211
  %v213 = vrot.slane %v182, %v212
  %v214 = vmul.f32 %v213, %v187
  %v215 = vsub.f32 %v214, %v209
  %v216 = vmul.f32 %v215, 1.442695
  %v217 = vpow.pop %v216
  %v218 = vlaneseq
  %v219 = vshrl.u32 %v218, 7
  %v220 = vsub.s32 0, %v219
  %v221 = vrot.slane %v192, %v220
  %v222 = vmul.f32 %v221, %v217
  %v223 = vlaneseq
  %v224 = vshrl.u32 %v223, 7
  %v225 = vsub.s32 1, %v224
  %v226 = vrot.slane %v182, %v225
  %v227 = vmul.f32 %v226, %v187
  %v228 = vsub.f32 %v227, %v209
  %v229 = vmul.f32 %v228, 1.442695
  %v230 = vpow.pop %v229
  %v231 = vadd.f32 %v217, %v230
  %v232 = vlaneseq
  %v233 = vshrl.u32 %v232, 7
  %v234 = vsub.s32 1, %v233
  %v235 = vrot.slane %v192, %v234
  %v236 = vmul.f32 %v235, %v230
  %v237 = vadd.f32 %v222, %v236
  %v238 = vlaneseq
  %v239 = vshrl.u32 %v238, 7
  %v240 = vsub.s32 2, %v239
  %v241 = vrot.slane %v182, %v240
  %v242 = vmul.f32 %v241, %v187
  %v243 = vsub.f32 %v242, %v209
  %v244 = vmul.f32 %v243, 1.442695
  %v245 = vpow.pop %v244
  %v246 = vadd.f32 %v231, %v245
  %v247 = vlaneseq
  %v248 = vshrl.u32 %v247, 7
  %v249 = vsub.s32 2, %v248
  %v250 = vrot.slane %v192, %v249
  %v251 = vmul.f32 %v250, %v245
  %v252 = vadd.f32 %v237, %v251
  %v253 = vlaneseq
  %v254 = vshrl.u32 %v253, 7
  %v255 = vsub.s32 3, %v254
  %v256 = vrot.slane %v182, %v255
  %v257 = vmul.f32 %v256, %v187
  %v258 = vsub.f32 %v257, %v209
  %v259 = vmul.f32 %v258, 1.442695
  %v260 = vpow.pop %v259
  %v261 = vadd.f32 %v246, %v260
  %v262 = vlaneseq
  %v263 = vshrl.u32 %v262, 7
  %v264 = vsub.s32 3, %v263
  %v265 = vrot.slane %v192, %v264
  %v266 = vmul.f32 %v265, %v260
  %v267 = vadd.f32 %v252, %v266
  %v268 = vlaneseq
  %v269 = vshrl.u32 %v268, 7
  %v270 = vsub.s32 4, %v269
  %v271 = vrot.slane %v182, %v270
  %v272 = vmul.f32 %v271, %v187
  %v273 = vsub.f32 %v272, %v209
  %v274 = vmul.f32 %v273, 1.442695
  %v275 = vpow.pop %v274
  %v276 = vadd.f32 %v261, %v275
  %v277 = vlaneseq
  %v278 = vshrl.u32 %v277, 7
  %v279 = vsub.s32 4, %v278
  %v280 = vrot.slane %v192, %v279
  %v281 = vmul.f32 %v280, %v275
  %v282 = vadd.f32 %v267, %v281
  %v283 = vlaneseq
  %v284 = vshrl.u32 %v283, 7
  %v285 = vsub.s32 5, %v284
  %v286 = vrot.slane %v182, %v285
  %v287 = vmul.f32 %v286, %v187
  %v288 = vsub.f32 %v287, %v209
  %v289 = vmul.f32 %v288, 1.442695
  %v290 = vpow.pop %v289
  %v291 = vadd.f32 %v276, %v290
  %v292 = vlaneseq
  %v293 = vshrl.u32 %v292, 7
  %v294 = vsub.s32 5, %v293
  %v295 = vrot.slane %v192, %v294
  %v296 = vmul.f32 %v295, %v290
  %v297 = vadd.f32 %v282, %v296
  %v298 = vlaneseq
  %v299 = vshrl.u32 %v298, 7
  %v300 = vsub.s32 6, %v299
  %v301 = vrot.slane %v182, %v300
  %v302 = vmul.f32 %v301, %v187
  %v303 = vsub.f32 %v302, %v209
  %v304 = vmul.f32 %v303, 1.442695
  %v305 = vpow.pop %v304
  %v306 = vadd.f32 %v291, %v305
  %v307 = vlaneseq
  %v308 = vshrl.u32 %v307, 7
  %v309 = vsub.s32 6, %v308
  %v310 = vrot.slane %v192, %v309
  %v311 = vmul.f32 %v310, %v305
  %v312 = vadd.f32 %v297, %v311
  %v313 = vlaneseq
  %v314 = vshrl.u32 %v313, 7
  %v315 = vsub.s32 7, %v314
  %v316 = vrot.slane %v182, %v315
  %v317 = vmul.f32 %v316, %v187
  %v318 = vsub.f32 %v317, %v209
  %v319 = vmul.f32 %v318, 1.442695
  %v320 = vpow.pop %v319
  %v321 = vadd.f32 %v306, %v320
  %v322 = vlaneseq
  %v323 = vshrl.u32 %v322, 7
  %v324 = vsub.s32 7, %v323
  %v325 = vrot.slane %v192, %v324
  %v326 = vmul.f32 %v325, %v320
  %v327 = vadd.f32 %v312, %v326
  %v328 = vrcp.pop %v321
  %v329 = vmul.f32 %v321, %v328
  %v330 = vsub.f32 2.0, %v329
  %v331 = vmul.f32 %v328, %v330
  %v332 = vmul.f32 %v327, %v331
  %v333 = vld [vmem:[%s3] sm:$0xff]
  %v334 = vld [vmem:[%s4] sm:$0x1]
  %v336 = vlaneseq
  %v337 = vshrl.u32 %v336, 7
  %v338 = vsub.s32 0, %v337
  %v339 = vrot.slane %v334, %v338
  %341 = vxpose.xlu0.b32.start [1/16] %v332, 128
  %342 = vxpose.xlu0.b32.cont [2/16] 0.0, 128
  %343 = vxpose.xlu0.b32.cont [3/16] 0.0, 128
  %344 = vxpose.xlu0.b32.cont [4/16] 0.0, 128
  %345 = vxpose.xlu0.b32.cont [5/16] 0.0, 128
  %346 = vxpose.xlu0.b32.cont [6/16] 0.0, 128
  %347 = vxpose.xlu0.b32.cont [7/16] 0.0, 128
  %348 = vxpose.xlu0.b32.cont [8/16] 0.0, 128
  %349 = vxpose.xlu0.b32.cont [9/16] 0.0, 128
  %350 = vxpose.xlu0.b32.cont [10/16] 0.0, 128
  %351 = vxpose.xlu0.b32.cont [11/16] 0.0, 128
  %352 = vxpose.xlu0.b32.cont [12/16] 0.0, 128
  %353 = vxpose.xlu0.b32.cont [13/16] 0.0, 128
  %354 = vxpose.xlu0.b32.cont [14/16] 0.0, 128
  %355 = vxpose.xlu0.b32.cont [15/16] 0.0, 128
  %356 = vxpose.xlu0.b32.end [16/16] 0.0, 128
  %v357 = vpop.trf.xlu0
  %v358 = vpop.trf.xlu0
  %v359 = vpop.trf.xlu0
  %v360 = vpop.trf.xlu0
  %v361 = vpop.trf.xlu0
  %v362 = vpop.trf.xlu0
  %v363 = vpop.trf.xlu0
  %v364 = vpop.trf.xlu0
  %v365 = vpop.trf.xlu0
  %v366 = vpop.trf.xlu0
  %v367 = vpop.trf.xlu0
  %v368 = vpop.trf.xlu0
  %v369 = vpop.trf.xlu0
  %v370 = vpop.trf.xlu0
  %v371 = vpop.trf.xlu0
  %v372 = vpop.trf.xlu0
  %vm373 = vcmask 64512
  %v375 = vsel %vm373, %v357, 0
  %v378 = vsel %vm373, %v358, 0
  %v381 = vsel %vm373, %v359, 0
  %v384 = vsel %vm373, %v360, 0
  %v387 = vsel %vm373, %v361, 0
  %v390 = vsel %vm373, %v362, 0
  %v393 = vsel %vm373, %v363, 0
  %v396 = vsel %vm373, %v364, 0
  %v399 = vsel %vm373, %v365, 0
  %v402 = vsel %vm373, %v366, 0
  %v405 = vsel %vm373, %v367, 0
  %v408 = vsel %vm373, %v368, 0
  %v411 = vsel %vm373, %v369, 0
  %v414 = vsel %vm373, %v370, 0
  %v417 = vsel %vm373, %v371, 0
  %v420 = vsel %vm373, %v372, 0
  %422 = vmatprep.subr.mxu0 0.0
  %423 = vmatpush1.msra.mxu0 %v333
  %424 = vmatprep.subr.mxu0 0.0
  %425 = vmatpush1.msra.mxu0 0.0
  %426 = vmatprep.subr.mxu0 0.0
  %427 = vmatpush1.msra.mxu0 0.0
  %428 = vmatprep.subr.mxu0 0.0
  %429 = vmatpush1.msra.mxu0 0.0
  %430 = vmatprep.subr.mxu0 0.0
  %431 = vmatpush1.msra.mxu0 0.0
  %432 = vmatprep.subr.mxu0 0.0
  %433 = vmatpush1.msra.mxu0 0.0
  %434 = vmatprep.subr.mxu0 0.0
  %435 = vmatpush1.msra.mxu0 0.0
  %436 = vmatprep.subr.mxu0 0.0
  %437 = vmatpush1.msra.mxu0 0.0
  %438 = vmatprep.subr.mxu0 0.0
  %439 = vmatpush1.msra.mxu0 0.0
  %440 = vmatprep.subr.mxu0 0.0
  %441 = vmatpush1.msra.mxu0 0.0
  %442 = vmatprep.subr.mxu0 0.0
  %443 = vmatpush1.msra.mxu0 0.0
  %444 = vmatprep.subr.mxu0 0.0
  %445 = vmatpush1.msra.mxu0 0.0
  %446 = vmatprep.subr.mxu0 0.0
  %447 = vmatpush1.msra.mxu0 0.0
  %448 = vmatprep.subr.mxu0 0.0
  %449 = vmatpush1.msra.mxu0 0.0
  %450 = vmatprep.subr.mxu0 0.0
  %451 = vmatpush1.msra.mxu0 0.0
  %452 = vmatprep.subr.mxu0 0.0
  %453 = vmatpush1.msra.mxu0 0.0
  %454 = vmatprep.subr.mxu0 0.0
  %455 = vmatpush1.msra.mxu0 0.0
  %456 = vmatprep.subr.mxu0 0.0
  %457 = vmatpush1.msra.mxu0 0.0
  %458 = vmatprep.subr.mxu0 0.0
  %459 = vmatpush1.msra.mxu0 0.0
  %460 = vmatprep.subr.mxu0 0.0
  %461 = vmatpush1.msra.mxu0 0.0
  %462 = vmatprep.subr.mxu0 0.0
  %463 = vmatpush1.msra.mxu0 0.0
  %464 = vmatprep.subr.mxu0 0.0
  %465 = vmatpush1.msra.mxu0 0.0
  %466 = vmatprep.subr.mxu0 0.0
  %467 = vmatpush1.msra.mxu0 0.0
  %468 = vmatprep.subr.mxu0 0.0
  %469 = vmatpush1.msra.mxu0 0.0
  %470 = vmatprep.subr.mxu0 0.0
  %471 = vmatpush1.msra.mxu0 0.0
  %472 = vmatprep.subr.mxu0 0.0
  %473 = vmatpush1.msra.mxu0 0.0
  %474 = vmatprep.subr.mxu0 0.0
  %475 = vmatpush1.msra.mxu0 0.0
  %476 = vmatprep.subr.mxu0 0.0
  %477 = vmatpush1.msra.mxu0 0.0
  %478 = vmatprep.subr.mxu0 0.0
  %479 = vmatpush1.msra.mxu0 0.0
  %480 = vmatprep.subr.mxu0 0.0
  %481 = vmatpush1.msra.mxu0 0.0
  %482 = vmatprep.subr.mxu0 0.0
  %483 = vmatpush1.msra.mxu0 0.0
  %484 = vmatprep.subr.mxu0 0.0
  %485 = vmatpush1.msra.mxu0 0.0
  %486 = vmatprep.mubr.f32.mxu0 0.0
  %487 = vmatmul.mubr.f32.gmra.mrb[0].mxu0 %v375
  %v488 = vpop.f32.mrb[0].mxu0
  %v489 = vadd.f32 %v339, %v488
  %v490 = vpop.f32.mrb[0].mxu0
  %491 = vmatprep.mubr.f32.mxu0 0.0
  %492 = vmatmul.mubr.f32.gmra.mrb[0].mxu0 %v378
  %v493 = vpop.f32.mrb[0].mxu0
  %v494 = vadd.f32 %v339, %v493
  %v495 = vpop.f32.mrb[0].mxu0
  %496 = vmatprep.mubr.f32.mxu0 0.0
  %497 = vmatmul.mubr.f32.gmra.mrb[0].mxu0 %v381
  %v498 = vpop.f32.mrb[0].mxu0
  %v499 = vadd.f32 %v339, %v498
  %v500 = vpop.f32.mrb[0].mxu0
  %501 = vmatprep.mubr.f32.mxu0 0.0
  %502 = vmatmul.mubr.f32.gmra.mrb[0].mxu0 %v384
  %v503 = vpop.f32.mrb[0].mxu0
  %v504 = vadd.f32 %v339, %v503
  %v505 = vpop.f32.mrb[0].mxu0
  %506 = vmatprep.mubr.f32.mxu0 0.0
  %507 = vmatmul.mubr.f32.gmra.mrb[0].mxu0 %v387
  %v508 = vpop.f32.mrb[0].mxu0
  %v509 = vadd.f32 %v339, %v508
  %v510 = vpop.f32.mrb[0].mxu0
  %511 = vmatprep.mubr.f32.mxu0 0.0
  %512 = vmatmul.mubr.f32.gmra.mrb[0].mxu0 %v390
  %v513 = vpop.f32.mrb[0].mxu0
  %v514 = vadd.f32 %v339, %v513
  %v515 = vpop.f32.mrb[0].mxu0
  %516 = vmatprep.mubr.f32.mxu0 0.0
  %517 = vmatmul.mubr.f32.gmra.mrb[0].mxu0 %v393
  %v518 = vpop.f32.mrb[0].mxu0
  %v519 = vadd.f32 %v339, %v518
  %v520 = vpop.f32.mrb[0].mxu0
  %521 = vmatprep.mubr.f32.mxu0 0.0
  %522 = vmatmul.mubr.f32.gmra.mrb[0].mxu0 %v396
  %v523 = vpop.f32.mrb[0].mxu0
  %v524 = vadd.f32 %v339, %v523
  %v525 = vpop.f32.mrb[0].mxu0
  %526 = vmatprep.mubr.f32.mxu0 0.0
  %527 = vmatmul.mubr.f32.gmra.mrb[0].mxu0 %v399
  %v528 = vpop.f32.mrb[0].mxu0
  %v529 = vadd.f32 %v339, %v528
  %v530 = vpop.f32.mrb[0].mxu0
  %531 = vmatprep.mubr.f32.mxu0 0.0
  %532 = vmatmul.mubr.f32.gmra.mrb[0].mxu0 %v402
  %v533 = vpop.f32.mrb[0].mxu0
  %v534 = vadd.f32 %v339, %v533
  %v535 = vpop.f32.mrb[0].mxu0
  %536 = vmatprep.mubr.f32.mxu0 0.0
  %537 = vmatmul.mubr.f32.gmra.mrb[0].mxu0 %v405
  %v538 = vpop.f32.mrb[0].mxu0
  %v539 = vadd.f32 %v339, %v538
  %v540 = vpop.f32.mrb[0].mxu0
  %541 = vmatprep.mubr.f32.mxu0 0.0
  %542 = vmatmul.mubr.f32.gmra.mrb[0].mxu0 %v408
  %v543 = vpop.f32.mrb[0].mxu0
  %v544 = vadd.f32 %v339, %v543
  %v545 = vpop.f32.mrb[0].mxu0
  %546 = vmatprep.mubr.f32.mxu0 0.0
  %547 = vmatmul.mubr.f32.gmra.mrb[0].mxu0 %v411
  %v548 = vpop.f32.mrb[0].mxu0
  %v549 = vadd.f32 %v339, %v548
  %v550 = vpop.f32.mrb[0].mxu0
  %551 = vmatprep.mubr.f32.mxu0 0.0
  %552 = vmatmul.mubr.f32.gmra.mrb[0].mxu0 %v414
  %v553 = vpop.f32.mrb[0].mxu0
  %v554 = vadd.f32 %v339, %v553
  %v555 = vpop.f32.mrb[0].mxu0
  %556 = vmatprep.mubr.f32.mxu0 0.0
  %557 = vmatmul.mubr.f32.gmra.mrb[0].mxu0 %v417
  %v558 = vpop.f32.mrb[0].mxu0
  %v559 = vadd.f32 %v339, %v558
  %v560 = vpop.f32.mrb[0].mxu0
  %561 = vmatprep.mubr.f32.mxu0 0.0
  %562 = vmatmul.mubr.f32.gmra.mrb[0].mxu0 %v420
  %v563 = vpop.f32.mrb[0].mxu0
  %v564 = vadd.f32 %v339, %v563
  %v565 = vpop.f32.mrb[0].mxu0
  %566 = vdwg.mxu0
  %567 = vst.msk [vmem:[%s5] sm:$0xff] %vm57, %v489
  %568 = vst.msk [vmem:[%s5 + $0x8] sm:$0xff] %vm57, %v494
  %569 = vst.msk [vmem:[%s5 + $0x10] sm:$0xff] %vm57, %v499
  %570 = vst.msk [vmem:[%s5 + $0x18] sm:$0xff] %vm57, %v504
  %571 = vst.msk [vmem:[%s5 + $0x20] sm:$0xff] %vm57, %v509
  %572 = vst.msk [vmem:[%s5 + $0x28] sm:$0xff] %vm57, %v514
  %573 = vst.msk [vmem:[%s5 + $0x30] sm:$0xff] %vm57, %v519
  %574 = vst.msk [vmem:[%s5 + $0x38] sm:$0xff] %vm57, %v524
  %575 = vst.msk [vmem:[%s5 + $0x40] sm:$0xff] %vm57, %v529
  %576 = vst.msk [vmem:[%s5 + $0x48] sm:$0xff] %vm57, %v534
  %577 = vst.msk [vmem:[%s5 + $0x50] sm:$0xff] %vm57, %v539
  %578 = vst.msk [vmem:[%s5 + $0x58] sm:$0xff] %vm57, %v544
  %579 = vst.msk [vmem:[%s5 + $0x60] sm:$0xff] %vm57, %v549
  %580 = vst.msk [vmem:[%s5 + $0x68] sm:$0xff] %vm57, %v554
  %581 = vst.msk [vmem:[%s5 + $0x70] sm:$0xff] %vm57, %v559
  %582 = vst.msk [vmem:[%s5 + $0x78] sm:$0xff] %vm57, %v564
  // Predicated region
  $region22: #{ultimus_block.1} parent=0 // pred_check
    _
  $region23: #{ultimus_block.1} parent=0 // pred_check_branch
    %584 = sbr.rel (0) target = $region25
  $region24: #{ultimus_block.1} parent=0 // pred_region
    _
  $region25: #{ultimus_block.1} parent=0 // pred_fallthru
    _
  // Predicated region
  $region26: #{ultimus_block.1} parent=0 // pred_check
    _
  $region27: #{ultimus_block.1} parent=0 // pred_check_branch
    %586 = sbr.rel (0) target = $region29
  $region28: #{ultimus_block.1} parent=0 // pred_region
    _
  $region29: #{ultimus_block.1} parent=0 // pred_fallthru
    _

</llo_original>
